<compile_context>
chip_gen: v7x
topology: tpu7x:2x2x1
jax: 0.10.0
libtpu: 0.0.40
codegen_flags: <defaults>
</compile_context>

<pallas_src>
import jax
import jax.numpy as jnp
from jax.experimental import pallas as pl
from jax.experimental.pallas import tpu as pltpu

BN_EPS = 1e-5
_LANE = 128          # v5e granule; on v6e/v7x rounding to 256 fills the 2x256 MXU
_BF16_SUBLANE = 16   # bf16 packs 16 rows per sublane tile


def _round_up(v, m):
    return ((v + m - 1) // m) * m


# --------------------------------------------------------------------------
# Kernel: one batch tile per grid step, three bf16 matmuls (f32 accumulate)
# for the whole ensemble. Bias-add + ReLU stay fused (VPU slack under MXU).
# --------------------------------------------------------------------------
def _fused_mlp_ensemble_kernel(x_ref, w0_ref, b0_ref, w1_ref, b1_ref,
                               wo_ref, bo_ref, out_ref):
    x = x_ref[...]                                                    # (TB, Fp) bf16

    # Layer 0 (BN already folded into w0/b0 in the wrapper) + ReLU.
    h = jnp.dot(x, w0_ref[...], preferred_element_type=jnp.float32) + b0_ref[...]
    h = jnp.maximum(h, 0.0).astype(jnp.bfloat16)                      # (TB, H0p)

    # Layer 1 (block-diagonal over nets) + ReLU.  Dropout == identity (eval).
    h = jnp.dot(h, w1_ref[...], preferred_element_type=jnp.float32) + b1_ref[...]
    h = jnp.maximum(h, 0.0).astype(jnp.bfloat16)                      # (TB, H1p)

    # Output layer (block-diagonal over nets), lane-dense f32 store.
    out_ref[...] = (jnp.dot(h, wo_ref[...], preferred_element_type=jnp.float32)
                    + bo_ref[...])                                    # (TB, Op)


# --------------------------------------------------------------------------
# Wrapper-side parameter preparation (one-time layout plumbing).
# --------------------------------------------------------------------------
def _block_diag(blocks):
    """blocks: (N, r, c) -> block-diagonal (N*r, N*c)."""
    n, r, c = blocks.shape
    out = jnp.zeros((n * r, n * c), blocks.dtype)
    for i in range(n):
        out = out.at[i * r:(i + 1) * r, i * c:(i + 1) * c].set(blocks[i])
    return out


def _pad2(a, rows, cols):
    return jnp.pad(a, ((0, rows - a.shape[0]), (0, cols - a.shape[1])))


def prepare_fused_params(params, lane_granule=_LANE):
    """Fold BN into layer 0, concat/block-diag nets, pre-transpose, pad, cast.

    Weights are cast to bf16 (native MXU format); biases stay f32.
    """
    gamma = params["gamma"][:, 0, :]       # (N, F)
    beta = params["beta"][:, 0, :]
    mean = params["mean"][:, 0, :]
    var = params["var"][:, 0, :]
    w0 = params["w0"]                      # (N, H0, F)  torch Linear layout
    b0 = params["b0"][:, 0, :]             # (N, H0)
    w1 = params["w1"]                      # (N, H1, H0)
    b1 = params["b1"][:, 0, :]             # (N, H1)
    wo = params["wo"]                      # (N, O, H1)
    bo = params["bo"][:, 0, :]             # (N, O)

    N, H0, F = w0.shape
    H1 = w1.shape[1]
    O = wo.shape[1]

    # Fold eval-mode BatchNorm into Linear0:
    #   x_bn = x*scale + shift  =>  x_bn @ w0.T + b0 = x @ (w0*scale).T + (b0 + shift @ w0.T)
    scale = gamma * jax.lax.rsqrt(var + BN_EPS)                # (N, F)
    shift = beta - mean * scale                                # (N, F)
    w0_fold = w0 * scale[:, None, :]                           # (N, H0, F)
    b0_fold = b0 + jnp.einsum("nf,nhf->nh", shift, w0)         # (N, H0)

    # Concatenate nets along the output-feature axis; pre-transpose weights.
    # TODO(synk): for large ensembles (N*H >> 256) replace the block-diagonal
    # w1/wo with a per-net grid axis to avoid N^2 zero-block FLOPs/VMEM.
    w0cat = jnp.transpose(w0_fold, (2, 0, 1)).reshape(F, N * H0)   # (F, N*H0)
    b0cat = b0_fold.reshape(1, N * H0)
    w1bd = _block_diag(jnp.transpose(w1, (0, 2, 1)))               # (N*H0, N*H1)
    b1cat = b1.reshape(1, N * H1)
    wobd = _block_diag(jnp.transpose(wo, (0, 2, 1)))               # (N*H1, N*O)
    bocat = bo.reshape(1, N * O)

    # Pad all lane dims up to multiples of the lane granule. Zero padding is
    # exact: padded bias lanes are 0, relu(0)=0, and the padded rows of the
    # next (block-diagonal) weight are zero, so nothing leaks into real lanes.
    fp = _round_up(F, lane_granule)
    h0p = _round_up(N * H0, lane_granule)
    h1p = _round_up(N * H1, lane_granule)
    op = _round_up(N * O, lane_granule)

    fused = dict(
        w0=_pad2(w0cat, fp, h0p).astype(jnp.bfloat16),
        b0=_pad2(b0cat, 1, h0p),                          # f32
        w1=_pad2(w1bd, h0p, h1p).astype(jnp.bfloat16),
        b1=_pad2(b1cat, 1, h1p),                          # f32
        wo=_pad2(wobd, h1p, op).astype(jnp.bfloat16),
        bo=_pad2(bocat, 1, op),                           # f32
    )
    dims = dict(num_nets=N, in_features=F, out_features=O,
                fp=fp, h0p=h0p, h1p=h1p, op=op)
    return fused, dims


def mlp_ensemble_forward(x, fused, dims, *, tb=None):
    """x: (B, F) float32 -> (B, out_features, num_nets), matching torch.stack(dim=-1)."""
    B, F = x.shape
    fp, h0p, h1p, op = dims["fp"], dims["h0p"], dims["h1p"], dims["op"]

    # Batch tile: multiple of 16 (bf16 sublane packing); cap so tiles pipeline.
    if tb is None:
        tb = min(256, _round_up(max(B, 1), _BF16_SUBLANE))
    tb = _round_up(tb, _BF16_SUBLANE)
    bp = _round_up(B, tb)
    n_tiles = pl.cdiv(bp, tb)

    xp = jnp.pad(x, ((0, bp - B), (0, fp - F))).astype(jnp.bfloat16)

    # Advisory cost estimate (lets XLA schedule around the call).
    flops = 2 * bp * (fp * h0p + h0p * h1p + h1p * op)
    bytes_accessed = (bp * fp * 2                                  # x (bf16)
                      + (fp * h0p + h0p * h1p + h1p * op) * 2      # weights (bf16)
                      + (h0p + h1p + op) * 4                       # biases (f32)
                      + bp * op * 4)                               # out (f32)

    # VMEM budget: resident weights/biases + double-buffered x/out tiles +
    # (TB, H0p)/(TB, H1p) intermediates, with headroom; capped for v7x (64 MiB).
    weight_bytes = ((fp * h0p + h0p * h1p + h1p * op) * 2
                    + (h0p + h1p + op) * 4)
    tile_bytes = 2 * (tb * fp * 2) + 2 * (tb * op * 4) + 4 * tb * (h0p + h1p)
    vmem_limit = min(max(2 * (weight_bytes + tile_bytes) + (8 << 20), 16 << 20),
                     64 << 20)

    out_pad = pl.pallas_call(
        _fused_mlp_ensemble_kernel,
        out_shape=jax.ShapeDtypeStruct((bp, op), jnp.float32),
        grid_spec=pltpu.PrefetchScalarGridSpec(
            num_scalar_prefetch=0,
            grid=(n_tiles,),
            in_specs=[
                pl.BlockSpec((tb, fp), lambda i: (i, 0)),     # x: streamed per tile
                pl.BlockSpec((fp, h0p), lambda i: (0, 0)),    # weights/biases: resident
                pl.BlockSpec((1, h0p), lambda i: (0, 0)),
                pl.BlockSpec((h0p, h1p), lambda i: (0, 0)),
                pl.BlockSpec((1, h1p), lambda i: (0, 0)),
                pl.BlockSpec((h1p, op), lambda i: (0, 0)),
                pl.BlockSpec((1, op), lambda i: (0, 0)),
            ],
            out_specs=pl.BlockSpec((tb, op), lambda i: (i, 0)),
        ),
        compiler_params=pltpu.CompilerParams(
            dimension_semantics=("parallel",),    # shard batch tiles across TCs (v7x)
            vmem_limit_bytes=int(vmem_limit),
        ),
        cost_estimate=pl.CostEstimate(flops=flops, transcendentals=0,
                                      bytes_accessed=bytes_accessed),
    )(xp, fused["w0"], fused["b0"], fused["w1"], fused["b1"],
      fused["wo"], fused["bo"])

    N, O = dims["num_nets"], dims["out_features"]
    out = out_pad[:B, :N * O].reshape(B, N, O)
    return jnp.transpose(out, (0, 2, 1))          # (B, O, N) — torch.stack(dim=-1) layout


# --------------------------------------------------------------------------
# Parameter init mirroring the torch module (xavier_uniform_ weights, default
# Linear bias init, BatchNorm1d buffers) + pure-JAX reference forwards.
# --------------------------------------------------------------------------
def _xavier_uniform(key, shape):
    fan_out, fan_in = shape
    bound = (6.0 / (fan_in + fan_out)) ** 0.5
    return jax.random.uniform(key, shape, jnp.float32, -bound, bound)


def init_params(key, num_nets, in_features, hidden, out_features):
    H0, H1 = hidden
    keys = jax.random.split(key, 10)

    def stack_w(subkey, shape):
        ks = jax.random.split(subkey, num_nets)
        return jnp.stack([_xavier_uniform(k, shape) for k in ks], axis=0)

    def stack_b(subkey, size, fan_in):
        b = 1.0 / (fan_in ** 0.5)
        ks = jax.random.split(subkey, num_nets)
        return jnp.stack(
            [jax.random.uniform(k, (1, size), jnp.float32, -b, b) for k in ks], axis=0)

    w0 = stack_w(keys[0], (H0, in_features))
    w1 = stack_w(keys[1], (H1, H0))
    wo = stack_w(keys[2], (out_features, H1))
    b0 = stack_b(keys[3], H0, in_features)
    b1 = stack_b(keys[4], H1, H0)
    bo = stack_b(keys[5], out_features, H1)

    # Non-trivial BatchNorm stats so the BN-fold path is actually exercised.
    shape = (num_nets, 1, in_features)
    gamma = jax.random.uniform(keys[6], shape, jnp.float32, 0.5, 1.5)
    beta = 0.1 * jax.random.normal(keys[7], shape, jnp.float32)
    mean = jax.random.normal(keys[8], shape, jnp.float32)
    var = jax.random.uniform(keys[9], shape, jnp.float32, 0.5, 1.5)

    return dict(gamma=gamma, beta=beta, mean=mean, var=var,
                w0=w0, b0=b0, w1=w1, b1=b1, wo=wo, bo=bo)


def _reference_forward_f32(x, params):
    """Pure-JAX f32 reference of the torch ensemble forward (eval mode)."""
    outs = []
    N = params["w0"].shape[0]
    for n in range(N):
        inv_std = jax.lax.rsqrt(params["var"][n] + BN_EPS)
        xb = (x - params["mean"][n]) * inv_std * params["gamma"][n] + params["beta"][n]
        h = jnp.maximum(xb @ params["w0"][n].T + params["b0"][n], 0.0)
        h = jnp.maximum(h @ params["w1"][n].T + params["b1"][n], 0.0)
        outs.append(h @ params["wo"][n].T + params["bo"][n])
    return jnp.stack(outs, axis=-1)


def _reference_forward_fused_bf16(x, fused, dims):
    """Pure-JAX replica of the exact fused/bf16 kernel math (layout check)."""
    B, F = x.shape
    xp = jnp.pad(x, ((0, 0), (0, dims["fp"] - F))).astype(jnp.bfloat16)
    h = jnp.dot(xp, fused["w0"], preferred_element_type=jnp.float32) + fused["b0"]
    h = jnp.maximum(h, 0.0).astype(jnp.bfloat16)
    h = jnp.dot(h, fused["w1"], preferred_element_type=jnp.float32) + fused["b1"]
    h = jnp.maximum(h, 0.0).astype(jnp.bfloat16)
    o = jnp.dot(h, fused["wo"], preferred_element_type=jnp.float32) + fused["bo"]
    N, O = dims["num_nets"], dims["out_features"]
    return jnp.transpose(o[:, :N * O].reshape(B, N, O), (0, 2, 1))


if __name__ == "__main__":
    # Small shapes consistent with the module (int in_features => 2-D input).
    batch = 8
    in_features = 16
    hidden_layers = [32, 32]
    out_features = 4
    num_nets = 3

    key = jax.random.PRNGKey(0)
    kx, kp, kx2 = jax.random.split(key, 3)
    x = jax.random.normal(kx, (batch, in_features), dtype=jnp.float32)
    params = init_params(kp, num_nets, in_features, hidden_layers, out_features)

    fused, dims = prepare_fused_params(params)

    # --- small-batch call (single grid tile) --------------------------------
    out = mlp_ensemble_forward(x, fused, dims)
    out = jax.block_until_ready(out)
    assert out.shape == (batch, out_features, num_nets), out.shape

    ref_bf16 = _reference_forward_fused_bf16(x, fused, dims)   # same math, pure JAX
    ref_f32 = _reference_forward_f32(x, params)                # full-precision torch semantics
    assert jnp.allclose(out, ref_bf16, atol=2e-3, rtol=2e-3), \
        f"kernel vs bf16 reference, max err {jnp.max(jnp.abs(out - ref_bf16))}"
    assert jnp.allclose(out, ref_f32, atol=1e-1, rtol=5e-2), \
        f"kernel vs f32 reference, max err {jnp.max(jnp.abs(out - ref_f32))}"

    # --- larger batch exercising the multi-tile, double-buffered grid -------
    x2 = jax.random.normal(kx2, (200, in_features), dtype=jnp.float32)
    out2 = jax.block_until_ready(mlp_ensemble_forward(x2, fused, dims, tb=64))
    ref2_bf16 = _reference_forward_fused_bf16(x2, fused, dims)
    ref2_f32 = _reference_forward_f32(x2, params)
    assert out2.shape == (200, out_features, num_nets), out2.shape
    assert jnp.allclose(out2, ref2_bf16, atol=2e-3, rtol=2e-3), \
        f"multi-tile kernel vs bf16 reference, max err {jnp.max(jnp.abs(out2 - ref2_bf16))}"
    assert jnp.allclose(out2, ref2_f32, atol=1e-1, rtol=5e-2), \
        f"multi-tile kernel vs f32 reference, max err {jnp.max(jnp.abs(out2 - ref2_f32))}"

    print("KERNEL_OK")
</pallas_src>

<mosaic_0001>
module attributes {stable_mosaic.version = 11 : i64} {
  func.func @_fused_mlp_ensemble_kernel(%arg0: i32, %arg1: memref<16x128xbf16, #tpu.memory_space<vmem>>, %arg2: memref<128x128xbf16, #tpu.memory_space<vmem>>, %arg3: memref<1x128xf32, #tpu.memory_space<vmem>>, %arg4: memref<128x128xbf16, #tpu.memory_space<vmem>>, %arg5: memref<1x128xf32, #tpu.memory_space<vmem>>, %arg6: memref<128x128xbf16, #tpu.memory_space<vmem>>, %arg7: memref<1x128xf32, #tpu.memory_space<vmem>>, %arg8: memref<16x128xf32, #tpu.memory_space<vmem>>) attributes {dimension_semantics = [#tpu.dimension_semantics<parallel>], iteration_bounds = array<i64: 1>, scalar_prefetch = 0 : i64, scratch_operands = 0 : i64, tpu.core_type = #tpu.core_type<tc>, window_params = [{transform_indices = @transform_0, window_bounds = array<i64: 16, 128>}, {pipeline_mode = #tpu.pipeline_mode<synchronous>, transform_indices = @transform_1, window_bounds = array<i64: 128, 128>}, {pipeline_mode = #tpu.pipeline_mode<synchronous>, transform_indices = @transform_2, window_bounds = array<i64: 1, 128>}, {pipeline_mode = #tpu.pipeline_mode<synchronous>, transform_indices = @transform_3, window_bounds = array<i64: 128, 128>}, {pipeline_mode = #tpu.pipeline_mode<synchronous>, transform_indices = @transform_4, window_bounds = array<i64: 1, 128>}, {pipeline_mode = #tpu.pipeline_mode<synchronous>, transform_indices = @transform_5, window_bounds = array<i64: 128, 128>}, {pipeline_mode = #tpu.pipeline_mode<synchronous>, transform_indices = @transform_6, window_bounds = array<i64: 1, 128>}, {transform_indices = @transform_7, window_bounds = array<i64: 16, 128>}]} {
    %c0 = arith.constant 0 : index
    %c0_0 = arith.constant 0 : index
    %0 = vector.load %arg1[%c0, %c0_0] : memref<16x128xbf16, #tpu.memory_space<vmem>>, vector<16x128xbf16>
    %c0_1 = arith.constant 0 : index
    %c0_2 = arith.constant 0 : index
    %1 = vector.load %arg2[%c0_1, %c0_2] : memref<128x128xbf16, #tpu.memory_space<vmem>>, vector<128x128xbf16>
    %cst = arith.constant dense<0.000000e+00> : vector<16x128xf32>
    %2 = tpu.matmul %0, %1, %cst {dimension_numbers = #tpu.dot_dimension_numbers<[1], [0], [0], [1], [0, 0, 1, 1], [], []>} : vector<16x128xbf16>, vector<128x128xbf16>, vector<16x128xf32> -> vector<16x128xf32>
    %c0_3 = arith.constant 0 : index
    %c0_4 = arith.constant 0 : index
    %3 = vector.load %arg3[%c0_3, %c0_4] : memref<1x128xf32, #tpu.memory_space<vmem>>, vector<1x128xf32>
    %4 = vector.broadcast %3 : vector<1x128xf32> to vector<16x128xf32>
    %5 = arith.addf %2, %4 : vector<16x128xf32>
    %cst_5 = arith.constant 0.000000e+00 : f32
    %6 = vector.broadcast %cst_5 : f32 to vector<16x128xf32>
    %7 = arith.maximumf %5, %6 : vector<16x128xf32>
    %8 = arith.truncf %7 : vector<16x128xf32> to vector<16x128xbf16>
    %c0_6 = arith.constant 0 : index
    %c0_7 = arith.constant 0 : index
    %9 = vector.load %arg4[%c0_6, %c0_7] : memref<128x128xbf16, #tpu.memory_space<vmem>>, vector<128x128xbf16>
    %cst_8 = arith.constant dense<0.000000e+00> : vector<16x128xf32>
    %10 = tpu.matmul %8, %9, %cst_8 {dimension_numbers = #tpu.dot_dimension_numbers<[1], [0], [0], [1], [0, 0, 1, 1], [], []>} : vector<16x128xbf16>, vector<128x128xbf16>, vector<16x128xf32> -> vector<16x128xf32>
    %c0_9 = arith.constant 0 : index
    %c0_10 = arith.constant 0 : index
    %11 = vector.load %arg5[%c0_9, %c0_10] : memref<1x128xf32, #tpu.memory_space<vmem>>, vector<1x128xf32>
    %12 = vector.broadcast %11 : vector<1x128xf32> to vector<16x128xf32>
    %13 = arith.addf %10, %12 : vector<16x128xf32>
    %cst_11 = arith.constant 0.000000e+00 : f32
    %14 = vector.broadcast %cst_11 : f32 to vector<16x128xf32>
    %15 = arith.maximumf %13, %14 : vector<16x128xf32>
    %16 = arith.truncf %15 : vector<16x128xf32> to vector<16x128xbf16>
    %c0_12 = arith.constant 0 : index
    %c0_13 = arith.constant 0 : index
    %17 = vector.load %arg6[%c0_12, %c0_13] : memref<128x128xbf16, #tpu.memory_space<vmem>>, vector<128x128xbf16>
    %cst_14 = arith.constant dense<0.000000e+00> : vector<16x128xf32>
    %18 = tpu.matmul %16, %17, %cst_14 {dimension_numbers = #tpu.dot_dimension_numbers<[1], [0], [0], [1], [0, 0, 1, 1], [], []>} : vector<16x128xbf16>, vector<128x128xbf16>, vector<16x128xf32> -> vector<16x128xf32>
    %c0_15 = arith.constant 0 : index
    %c0_16 = arith.constant 0 : index
    %19 = vector.load %arg7[%c0_15, %c0_16] : memref<1x128xf32, #tpu.memory_space<vmem>>, vector<1x128xf32>
    %20 = vector.broadcast %19 : vector<1x128xf32> to vector<16x128xf32>
    %21 = arith.addf %18, %20 : vector<16x128xf32>
    %c0_17 = arith.constant 0 : index
    %c0_18 = arith.constant 0 : index
    %22 = vector.load %arg8[%c0_17, %c0_18] : memref<16x128xf32, #tpu.memory_space<vmem>>, vector<16x128xf32>
    tpu.vector_store %arg8[%c0_17, %c0_18], %21 {strides = array<i32>} : memref<16x128xf32, #tpu.memory_space<vmem>>, vector<16x128xf32>,
    return
  }
  func.func @transform_0(%arg0: i32) -> (i32, i32) {
    %c0_i32 = arith.constant 0 : i32
    %c0_i32_0 = arith.constant 0 : i32
    return %arg0, %c0_i32 : i32, i32
  }
  func.func @transform_1(%arg0: i32) -> (i32, i32) {
    %c0_i32 = arith.constant 0 : i32
    %c0_i32_0 = arith.constant 0 : i32
    %c0_i32_1 = arith.constant 0 : i32
    return %c0_i32, %c0_i32_0 : i32, i32
  }
  func.func @transform_2(%arg0: i32) -> (i32, i32) {
    %c0_i32 = arith.constant 0 : i32
    %c0_i32_0 = arith.constant 0 : i32
    %c0_i32_1 = arith.constant 0 : i32
    return %c0_i32, %c0_i32_0 : i32, i32
  }
  func.func @transform_3(%arg0: i32) -> (i32, i32) {
    %c0_i32 = arith.constant 0 : i32
    %c0_i32_0 = arith.constant 0 : i32
    %c0_i32_1 = arith.constant 0 : i32
    return %c0_i32, %c0_i32_0 : i32, i32
  }
  func.func @transform_4(%arg0: i32) -> (i32, i32) {
    %c0_i32 = arith.constant 0 : i32
    %c0_i32_0 = arith.constant 0 : i32
    %c0_i32_1 = arith.constant 0 : i32
    return %c0_i32, %c0_i32_0 : i32, i32
  }
  func.func @transform_5(%arg0: i32) -> (i32, i32) {
    %c0_i32 = arith.constant 0 : i32
    %c0_i32_0 = arith.constant 0 : i32
    %c0_i32_1 = arith.constant 0 : i32
    return %c0_i32, %c0_i32_0 : i32, i32
  }
  func.func @transform_6(%arg0: i32) -> (i32, i32) {
    %c0_i32 = arith.constant 0 : i32
    %c0_i32_0 = arith.constant 0 : i32
    %c0_i32_1 = arith.constant 0 : i32
    return %c0_i32, %c0_i32_0 : i32, i32
  }
  func.func @transform_7(%arg0: i32) -> (i32, i32) {
    %c0_i32 = arith.constant 0 : i32
    %c0_i32_0 = arith.constant 0 : i32
    return %arg0, %c0_i32 : i32, i32
  }
}

</mosaic_0001>

<llo_original>
// kernel: tpu_custom_call.1
$region0: #{tpu_custom_call.1}
  #allocation0 [shape = 'u32[]', space=smem, size = 0x4, offset = 0x4, fixed_abs, tag = 'smem constant byte address 0x4 - core index']
  #allocation1 [shape = 'u32[144,128]{1,0:T(1,128)}', space=vmem, size = 0x12000, scoped, tag = 'internal scratch']
  %s0 = inlined_call_operand.hbm [shape: bf16[16,128], index: 0, kind: input, shape index: {}]
  %s1 = inlined_call_operand.hbm [shape: bf16[128,128], index: 1, kind: input, shape index: {}]
  %s2 = inlined_call_operand.vmem [shape: f32[1,128], index: 2, kind: input, shape index: {}]
  %s3 = inlined_call_operand.hbm [shape: bf16[128,128], index: 3, kind: input, shape index: {}]
  %s4 = inlined_call_operand.vmem [shape: f32[1,128], index: 4, kind: input, shape index: {}]
  %s5 = inlined_call_operand.hbm [shape: bf16[128,128], index: 5, kind: input, shape index: {}]
  %s6 = inlined_call_operand.vmem [shape: f32[1,128], index: 6, kind: input, shape index: {}]
  %s7 = inlined_call_operand.hbm [shape: f32[16,128], index: 7, kind: output, shape index: {}]
  %s8 = sld [smem:[#allocation0]]
  $region54: #{tpu_custom_call.1} parent=0
    _
  %s10 = ssub.s32 1, %s8
  %s11 = scalar_select 0, %s10, %s8
  $region1: #{tpu_custom_call.1} parent=0
    #allocation2 [shape = 'u8[4096]{0}', space=vmem, size = 0x1000, scoped, tag = 'input window, operand 0, single buffered']
    #allocation3 [shape = 's32[1]{0}', space=sflag, size = 0x4, scoped, tag = 'scoped memory for tpu_custom_call.1']
    #allocation4 [shape = 's32[1]{0}', space=sflag, size = 0x4, scoped, tag = 'scoped memory for tpu_custom_call.1']
    #allocation5 [shape = 'u8[32768]{0}', space=vmem, size = 0x8000, scoped, tag = 'input window, operand 1, single buffered']
    #allocation6 [shape = 's32[1]{0}', space=sflag, size = 0x4, scoped, tag = 'scoped memory for tpu_custom_call.1']
    #allocation7 [shape = 'u8[32768]{0}', space=vmem, size = 0x8000, scoped, tag = 'input window, operand 3, single buffered']
    #allocation8 [shape = 'u8[32768]{0}', space=vmem, size = 0x8000, scoped, tag = 'input window, operand 5, single buffered']
    #allocation9 [shape = 's32[1]{0}', space=sflag, size = 0x4, scoped, tag = 'scoped memory for tpu_custom_call.1']
    #allocation10 [shape = 'u8[8192]{0}', space=vmem, size = 0x2000, scoped, tag = 'output window, operand 0, single buffered']
    %12 = vsyncpa [#allocation3], 0
    %13 = vsyncpa [#allocation6], 0
    %14 = vsyncpa [#allocation9], 0
    %15 = vsyncpa [#allocation4], 0
    // Predicated region
    $region2: #{tpu_custom_call.1} parent=1 // pred_check
      _
    $region3: #{tpu_custom_call.1} parent=1 // pred_check_branch
      %17 = sbr.rel (0) target = $region5
    $region4: #{tpu_custom_call.1} parent=1 // pred_region
      %s19 = ssub.s32 128, 128
      %20 = vsyncadd [#allocation3], %s19
      %s21 = sshll.u32 [#allocation2], 4
      %s22 = int_to_ptr.vmem [resolvable:$true] %s21
      %27 = dma.hbm_to_vmem [thread:$0]  %s0, 128, %s22, [#allocation3], 64, 64, 4
    $region5: #{tpu_custom_call.1} parent=1 // pred_fallthru
      _
    // Predicated region
    $region6: #{tpu_custom_call.1} parent=1 // pred_check
      _
    $region7: #{tpu_custom_call.1} parent=1 // pred_check_branch
      %29 = sbr.rel (0) target = $region9
    $region8: #{tpu_custom_call.1} parent=1 // pred_region
      %s31 = ssub.s32 1024, 1024
      %32 = vsyncadd [#allocation6], %s31
      %s33 = sshll.u32 [#allocation5], 4
      %s34 = int_to_ptr.vmem [resolvable:$true] %s33
      %39 = dma.hbm_to_vmem [thread:$0]  %s1, 1024, %s34, [#allocation6], 64, 64, 4
    $region9: #{tpu_custom_call.1} parent=1 // pred_fallthru
      _
    // Predicated region
    $region10: #{tpu_custom_call.1} parent=1 // pred_check
      _
    $region11: #{tpu_custom_call.1} parent=1 // pred_check_branch
      %41 = sbr.rel (0) target = $region13
    $region12: #{tpu_custom_call.1} parent=1 // pred_region
      _
    $region13: #{tpu_custom_call.1} parent=1 // pred_fallthru
      _
    // Predicated region
    $region14: #{tpu_custom_call.1} parent=1 // pred_check
      _
    $region15: #{tpu_custom_call.1} parent=1 // pred_check_branch
      %43 = sbr.rel (0) target = $region17
    $region16: #{tpu_custom_call.1} parent=1 // pred_region
      %s45 = ssub.s32 1024, 1024
      %46 = vsyncadd [#allocation6], %s45
      %s47 = sshll.u32 [#allocation7], 4
      %s48 = int_to_ptr.vmem [resolvable:$true] %s47
      %53 = dma.hbm_to_vmem [thread:$0]  %s3, 1024, %s48, [#allocation6], 64, 64, 4
    $region17: #{tpu_custom_call.1} parent=1 // pred_fallthru
      _
    // Predicated region
    $region18: #{tpu_custom_call.1} parent=1 // pred_check
      _
    $region19: #{tpu_custom_call.1} parent=1 // pred_check_branch
      %55 = sbr.rel (0) target = $region21
    $region20: #{tpu_custom_call.1} parent=1 // pred_region
      _
    $region21: #{tpu_custom_call.1} parent=1 // pred_fallthru
      _
    // Predicated region
    $region22: #{tpu_custom_call.1} parent=1 // pred_check
      _
    $region23: #{tpu_custom_call.1} parent=1 // pred_check_branch
      %57 = sbr.rel (0) target = $region25
    $region24: #{tpu_custom_call.1} parent=1 // pred_region
      %s59 = ssub.s32 1024, 1024
      %60 = vsyncadd [#allocation9], %s59
      %s61 = sshll.u32 [#allocation8], 4
      %s62 = int_to_ptr.vmem [resolvable:$true] %s61
      %67 = dma.hbm_to_vmem [thread:$0]  %s5, 1024, %s62, [#allocation9], 64, 64, 4
    $region25: #{tpu_custom_call.1} parent=1 // pred_fallthru
      _
    // Predicated region
    $region26: #{tpu_custom_call.1} parent=1 // pred_check
      _
    $region27: #{tpu_custom_call.1} parent=1 // pred_check_branch
      %69 = sbr.rel (0) target = $region29
    $region28: #{tpu_custom_call.1} parent=1 // pred_region
      _
    $region29: #{tpu_custom_call.1} parent=1 // pred_fallthru
      _
    // Predicated region
    $region30: #{tpu_custom_call.1} parent=1 // pred_check
      _
    $region31: #{tpu_custom_call.1} parent=1 // pred_check_branch
      %71 = sbr.rel (0) target = $region33
    $region32: #{tpu_custom_call.1} parent=1 // pred_region
      %72 = dma.done [#allocation3], 128
    $region33: #{tpu_custom_call.1} parent=1 // pred_fallthru
      _
    // Predicated region
    $region34: #{tpu_custom_call.1} parent=1 // pred_check
      _
    $region35: #{tpu_custom_call.1} parent=1 // pred_check_branch
      %74 = sbr.rel (0) target = $region37
    $region36: #{tpu_custom_call.1} parent=1 // pred_region
      %75 = dma.done [#allocation6], 1024
    $region37: #{tpu_custom_call.1} parent=1 // pred_fallthru
      _
    // Predicated region
    $region38: #{tpu_custom_call.1} parent=1 // pred_check
      _
    $region39: #{tpu_custom_call.1} parent=1 // pred_check_branch
      %77 = sbr.rel (0) target = $region41
    $region40: #{tpu_custom_call.1} parent=1 // pred_region
      %78 = dma.done [#allocation6], 1024
    $region41: #{tpu_custom_call.1} parent=1 // pred_fallthru
      _
    // Predicated region
    $region42: #{tpu_custom_call.1} parent=1 // pred_check
      _
    $region43: #{tpu_custom_call.1} parent=1 // pred_check_branch
      %80 = sbr.rel (0) target = $region45
    $region44: #{tpu_custom_call.1} parent=1 // pred_region
      %81 = dma.done [#allocation9], 1024
    $region45: #{tpu_custom_call.1} parent=1 // pred_fallthru
      _
    %v83 = vld [vmem:[#allocation2] sm:$0xf]
    %v84 = vld [vmem:[#allocation2 + $0x4] sm:$0xf]
    %v85 = vld [vmem:[#allocation5] sm:$0xf]
    %v86 = vld [vmem:[#allocation5 + $0x4] sm:$0xf]
    %v87 = vld [vmem:[#allocation5 + $0x8] sm:$0xf]
    %v88 = vld [vmem:[#allocation5 + $0xc] sm:$0xf]
    %v89 = vld [vmem:[#allocation5 + $0x10] sm:$0xf]
    %v90 = vld [vmem:[#allocation5 + $0x14] sm:$0xf]
    %v91 = vld [vmem:[#allocation5 + $0x18] sm:$0xf]
    %v92 = vld [vmem:[#allocation5 + $0x1c] sm:$0xf]
    %v93 = vld [vmem:[#allocation5 + $0x20] sm:$0xf]
    %v94 = vld [vmem:[#allocation5 + $0x24] sm:$0xf]
    %v95 = vld [vmem:[#allocation5 + $0x28] sm:$0xf]
    %v96 = vld [vmem:[#allocation5 + $0x2c] sm:$0xf]
    %v97 = vld [vmem:[#allocation5 + $0x30] sm:$0xf]
    %v98 = vld [vmem:[#allocation5 + $0x34] sm:$0xf]
    %v99 = vld [vmem:[#allocation5 + $0x38] sm:$0xf]
    %v100 = vld [vmem:[#allocation5 + $0x3c] sm:$0xf]
    %v101 = vld [vmem:[%s2] sm:$0x1]
    %v103 = vlaneseq
    %v104 = vshrl.u32 %v103, 7
    %v105 = vsub.s32 0, %v104
    %v106 = vrot.slane %v101, %v105
    %v110 = vunpack.c.l.b16 %v83
    %v111 = vunpack.c.l.b16 %v84
    %v112 = vpack.c.b16 %v111, %v110
    %v130 = vunpack.c.l.b16 %v85
    %v131 = vunpack.c.l.b16 %v86
    %v132 = vunpack.c.l.b16 %v87
    %v133 = vunpack.c.l.b16 %v88
    %v134 = vunpack.c.l.b16 %v89
    %v135 = vunpack.c.l.b16 %v90
    %v136 = vunpack.c.l.b16 %v91
    %v137 = vunpack.c.l.b16 %v92
    %v138 = vunpack.c.l.b16 %v93
    %v139 = vunpack.c.l.b16 %v94
    %v140 = vunpack.c.l.b16 %v95
    %v141 = vunpack.c.l.b16 %v96
    %v142 = vunpack.c.l.b16 %v97
    %v143 = vunpack.c.l.b16 %v98
    %v144 = vunpack.c.l.b16 %v99
    %v145 = vunpack.c.l.b16 %v100
    %v146 = vpack.c.b16 %v131, %v130
    %v147 = vpack.c.b16 %v133, %v132
    %v148 = vpack.c.b16 %v135, %v134
    %v149 = vpack.c.b16 %v137, %v136
    %v150 = vpack.c.b16 %v139, %v138
    %v151 = vpack.c.b16 %v141, %v140
    %v152 = vpack.c.b16 %v143, %v142
    %v153 = vpack.c.b16 %v145, %v144
    %162 = vmatprep.subr.bf16.mxu0 0
    %163 = vmatpush1.bf16.msra.mxu0 %v146
    %164 = vmatprep.subr.bf16.mxu0 0
    %165 = vmatpush1.bf16.msra.mxu0 %v147
    %166 = vmatprep.subr.bf16.mxu0 0
    %167 = vmatpush1.bf16.msra.mxu0 %v148
    %168 = vmatprep.subr.bf16.mxu0 0
    %169 = vmatpush1.bf16.msra.mxu0 %v149
    %170 = vmatprep.subr.bf16.mxu0 0
    %171 = vmatpush1.bf16.msra.mxu0 %v150
    %172 = vmatprep.subr.bf16.mxu0 0
    %173 = vmatpush1.bf16.msra.mxu0 %v151
    %174 = vmatprep.subr.bf16.mxu0 0
    %175 = vmatpush1.bf16.msra.mxu0 %v152
    %176 = vmatprep.subr.bf16.mxu0 0
    %177 = vmatpush1.bf16.msra.mxu0 %v153
    %178 = vmatprep.subr.bf16.mxu0 0
    %179 = vmatpush1.bf16.msra.mxu0 0
    %180 = vmatprep.subr.bf16.mxu0 0
    %181 = vmatpush1.bf16.msra.mxu0 0
    %182 = vmatprep.subr.bf16.mxu0 0
    %183 = vmatpush1.bf16.msra.mxu0 0
    %184 = vmatprep.subr.bf16.mxu0 0
    %185 = vmatpush1.bf16.msra.mxu0 0
    %186 = vmatprep.subr.bf16.mxu0 0
    %187 = vmatpush1.bf16.msra.mxu0 0
    %188 = vmatprep.subr.bf16.mxu0 0
    %189 = vmatpush1.bf16.msra.mxu0 0
    %190 = vmatprep.subr.bf16.mxu0 0
    %191 = vmatpush1.bf16.msra.mxu0 0
    %192 = vmatprep.subr.bf16.mxu0 0
    %193 = vmatpush1.bf16.msra.mxu0 0
    %194 = vmatprep.mubr.bf16.mxu0 0
    %195 = vmatmul.mubr.bf16.gmra.mrb[0].mxu0 %v112
    %v196 = vpop.f32.mrb[0].mxu0
    %v197 = vadd.f32 %v106, %v196
    %v198 = vpop.f32.mrb[0].mxu0
    %v199 = vpop.f32.mrb[0].mxu0
    %v200 = vadd.f32 %v106, %v199
    %v201 = vpop.f32.mrb[0].mxu0
    %202 = vdwg.mxu0
    %v203 = vmax.f32 %v197, 0.0
    %v204 = vmax.f32 %v200, 0.0
    %v205 = vpack.c.bf16 %v204, %v203
    %v206 = vld [vmem:[#allocation7] sm:$0xf]
    %v207 = vld [vmem:[#allocation7 + $0x4] sm:$0xf]
    %v208 = vld [vmem:[#allocation7 + $0x8] sm:$0xf]
    %v209 = vld [vmem:[#allocation7 + $0xc] sm:$0xf]
    %v210 = vld [vmem:[#allocation7 + $0x10] sm:$0xf]
    %v211 = vld [vmem:[#allocation7 + $0x14] sm:$0xf]
    %v212 = vld [vmem:[#allocation7 + $0x18] sm:$0xf]
    %v213 = vld [vmem:[#allocation7 + $0x1c] sm:$0xf]
    %v214 = vld [vmem:[#allocation7 + $0x20] sm:$0xf]
    %v215 = vld [vmem:[#allocation7 + $0x24] sm:$0xf]
    %v216 = vld [vmem:[#allocation7 + $0x28] sm:$0xf]
    %v217 = vld [vmem:[#allocation7 + $0x2c] sm:$0xf]
    %v218 = vld [vmem:[#allocation7 + $0x30] sm:$0xf]
    %v219 = vld [vmem:[#allocation7 + $0x34] sm:$0xf]
    %v220 = vld [vmem:[#allocation7 + $0x38] sm:$0xf]
    %v221 = vld [vmem:[#allocation7 + $0x3c] sm:$0xf]
    %v222 = vld [vmem:[%s4] sm:$0x1]
    %v224 = vlaneseq
    %v225 = vshrl.u32 %v224, 7
    %v226 = vsub.s32 0, %v225
    %v227 = vrot.slane %v222, %v226
    %v245 = vunpack.c.l.b16 %v206
    %v246 = vunpack.c.l.b16 %v207
    %v247 = vunpack.c.l.b16 %v208
    %v248 = vunpack.c.l.b16 %v209
    %v249 = vunpack.c.l.b16 %v210
    %v250 = vunpack.c.l.b16 %v211
    %v251 = vunpack.c.l.b16 %v212
    %v252 = vunpack.c.l.b16 %v213
    %v253 = vunpack.c.l.b16 %v214
    %v254 = vunpack.c.l.b16 %v215
    %v255 = vunpack.c.l.b16 %v216
    %v256 = vunpack.c.l.b16 %v217
    %v257 = vunpack.c.l.b16 %v218
    %v258 = vunpack.c.l.b16 %v219
    %v259 = vunpack.c.l.b16 %v220
    %v260 = vunpack.c.l.b16 %v221
    %v261 = vpack.c.b16 %v246, %v245
    %v262 = vpack.c.b16 %v248, %v247
    %v263 = vpack.c.b16 %v250, %v249
    %v264 = vpack.c.b16 %v252, %v251
    %v265 = vpack.c.b16 %v254, %v253
    %v266 = vpack.c.b16 %v256, %v255
    %v267 = vpack.c.b16 %v258, %v257
    %v268 = vpack.c.b16 %v260, %v259
    %277 = vmatprep.subr.bf16.mxu0 0
    %278 = vmatpush1.bf16.msra.mxu0 %v261
    %279 = vmatprep.subr.bf16.mxu0 0
    %280 = vmatpush1.bf16.msra.mxu0 %v262
    %281 = vmatprep.subr.bf16.mxu0 0
    %282 = vmatpush1.bf16.msra.mxu0 %v263
    %283 = vmatprep.subr.bf16.mxu0 0
    %284 = vmatpush1.bf16.msra.mxu0 %v264
    %285 = vmatprep.subr.bf16.mxu0 0
    %286 = vmatpush1.bf16.msra.mxu0 %v265
    %287 = vmatprep.subr.bf16.mxu0 0
    %288 = vmatpush1.bf16.msra.mxu0 %v266
    %289 = vmatprep.subr.bf16.mxu0 0
    %290 = vmatpush1.bf16.msra.mxu0 %v267
    %291 = vmatprep.subr.bf16.mxu0 0
    %292 = vmatpush1.bf16.msra.mxu0 %v268
    %293 = vmatprep.subr.bf16.mxu0 0
    %294 = vmatpush1.bf16.msra.mxu0 0
    %295 = vmatprep.subr.bf16.mxu0 0
    %296 = vmatpush1.bf16.msra.mxu0 0
    %297 = vmatprep.subr.bf16.mxu0 0
    %298 = vmatpush1.bf16.msra.mxu0 0
    %299 = vmatprep.subr.bf16.mxu0 0
    %300 = vmatpush1.bf16.msra.mxu0 0
    %301 = vmatprep.subr.bf16.mxu0 0
    %302 = vmatpush1.bf16.msra.mxu0 0
    %303 = vmatprep.subr.bf16.mxu0 0
    %304 = vmatpush1.bf16.msra.mxu0 0
    %305 = vmatprep.subr.bf16.mxu0 0
    %306 = vmatpush1.bf16.msra.mxu0 0
    %307 = vmatprep.subr.bf16.mxu0 0
    %308 = vmatpush1.bf16.msra.mxu0 0
    %309 = vmatprep.mubr.bf16.mxu0 0
    %310 = vmatmul.mubr.bf16.gmra.mrb[0].mxu0 %v205
    %v311 = vpop.f32.mrb[0].mxu0
    %v312 = vadd.f32 %v227, %v311
    %v313 = vpop.f32.mrb[0].mxu0
    %v314 = vpop.f32.mrb[0].mxu0
    %v315 = vadd.f32 %v227, %v314
    %v316 = vpop.f32.mrb[0].mxu0
    %317 = vdwg.mxu0
    %v318 = vmax.f32 %v312, 0.0
    %v319 = vmax.f32 %v315, 0.0
    %v320 = vpack.c.bf16 %v319, %v318
    %v321 = vld [vmem:[#allocation8] sm:$0xf]
    %v322 = vld [vmem:[#allocation8 + $0x4] sm:$0xf]
    %v323 = vld [vmem:[#allocation8 + $0x8] sm:$0xf]
    %v324 = vld [vmem:[#allocation8 + $0xc] sm:$0xf]
    %v325 = vld [vmem:[#allocation8 + $0x10] sm:$0xf]
    %v326 = vld [vmem:[#allocation8 + $0x14] sm:$0xf]
    %v327 = vld [vmem:[#allocation8 + $0x18] sm:$0xf]
    %v328 = vld [vmem:[#allocation8 + $0x1c] sm:$0xf]
    %v329 = vld [vmem:[#allocation8 + $0x20] sm:$0xf]
    %v330 = vld [vmem:[#allocation8 + $0x24] sm:$0xf]
    %v331 = vld [vmem:[#allocation8 + $0x28] sm:$0xf]
    %v332 = vld [vmem:[#allocation8 + $0x2c] sm:$0xf]
    %v333 = vld [vmem:[#allocation8 + $0x30] sm:$0xf]
    %v334 = vld [vmem:[#allocation8 + $0x34] sm:$0xf]
    %v335 = vld [vmem:[#allocation8 + $0x38] sm:$0xf]
    %v336 = vld [vmem:[#allocation8 + $0x3c] sm:$0xf]
    %v337 = vld [vmem:[%s6] sm:$0x1]
    %v339 = vlaneseq
    %v340 = vshrl.u32 %v339, 7
    %v341 = vsub.s32 0, %v340
    %v342 = vrot.slane %v337, %v341
    %v360 = vunpack.c.l.b16 %v321
    %v361 = vunpack.c.l.b16 %v322
    %v362 = vunpack.c.l.b16 %v323
    %v363 = vunpack.c.l.b16 %v324
    %v364 = vunpack.c.l.b16 %v325
    %v365 = vunpack.c.l.b16 %v326
    %v366 = vunpack.c.l.b16 %v327
    %v367 = vunpack.c.l.b16 %v328
    %v368 = vunpack.c.l.b16 %v329
    %v369 = vunpack.c.l.b16 %v330
    %v370 = vunpack.c.l.b16 %v331
    %v371 = vunpack.c.l.b16 %v332
    %v372 = vunpack.c.l.b16 %v333
    %v373 = vunpack.c.l.b16 %v334
    %v374 = vunpack.c.l.b16 %v335
    %v375 = vunpack.c.l.b16 %v336
    %v376 = vpack.c.b16 %v361, %v360
    %v377 = vpack.c.b16 %v363, %v362
    %v378 = vpack.c.b16 %v365, %v364
    %v379 = vpack.c.b16 %v367, %v366
    %v380 = vpack.c.b16 %v369, %v368
    %v381 = vpack.c.b16 %v371, %v370
    %v382 = vpack.c.b16 %v373, %v372
    %v383 = vpack.c.b16 %v375, %v374
    %392 = vmatprep.subr.bf16.mxu0 0
    %393 = vmatpush1.bf16.msra.mxu0 %v376
    %394 = vmatprep.subr.bf16.mxu0 0
    %395 = vmatpush1.bf16.msra.mxu0 %v377
    %396 = vmatprep.subr.bf16.mxu0 0
    %397 = vmatpush1.bf16.msra.mxu0 %v378
    %398 = vmatprep.subr.bf16.mxu0 0
    %399 = vmatpush1.bf16.msra.mxu0 %v379
    %400 = vmatprep.subr.bf16.mxu0 0
    %401 = vmatpush1.bf16.msra.mxu0 %v380
    %402 = vmatprep.subr.bf16.mxu0 0
    %403 = vmatpush1.bf16.msra.mxu0 %v381
    %404 = vmatprep.subr.bf16.mxu0 0
    %405 = vmatpush1.bf16.msra.mxu0 %v382
    %406 = vmatprep.subr.bf16.mxu0 0
    %407 = vmatpush1.bf16.msra.mxu0 %v383
    %408 = vmatprep.subr.bf16.mxu0 0
    %409 = vmatpush1.bf16.msra.mxu0 0
    %410 = vmatprep.subr.bf16.mxu0 0
    %411 = vmatpush1.bf16.msra.mxu0 0
    %412 = vmatprep.subr.bf16.mxu0 0
    %413 = vmatpush1.bf16.msra.mxu0 0
    %414 = vmatprep.subr.bf16.mxu0 0
    %415 = vmatpush1.bf16.msra.mxu0 0
    %416 = vmatprep.subr.bf16.mxu0 0
    %417 = vmatpush1.bf16.msra.mxu0 0
    %418 = vmatprep.subr.bf16.mxu0 0
    %419 = vmatpush1.bf16.msra.mxu0 0
    %420 = vmatprep.subr.bf16.mxu0 0
    %421 = vmatpush1.bf16.msra.mxu0 0
    %422 = vmatprep.subr.bf16.mxu0 0
    %423 = vmatpush1.bf16.msra.mxu0 0
    %424 = vmatprep.mubr.bf16.mxu0 0
    %425 = vmatmul.mubr.bf16.gmra.mrb[0].mxu0 %v320
    %v426 = vpop.f32.mrb[0].mxu0
    %v427 = vadd.f32 %v342, %v426
    %v428 = vpop.f32.mrb[0].mxu0
    %v429 = vpop.f32.mrb[0].mxu0
    %v430 = vadd.f32 %v342, %v429
    %v431 = vpop.f32.mrb[0].mxu0
    %432 = vdwg.mxu0
    %433 = vst [vmem:[#allocation10] sm:$0xff] %v427
    %434 = vst [vmem:[#allocation10 + $0x8] sm:$0xff] %v430
    // Predicated region
    $region46: #{tpu_custom_call.1} parent=1 // pred_check
      _
    $region47: #{tpu_custom_call.1} parent=1 // pred_check_branch
      %436 = sbr.rel (0) target = $region49
    $region48: #{tpu_custom_call.1} parent=1 // pred_region
      %s438 = ssub.s32 256, 256
      %439 = vsyncadd [#allocation4], %s438
      %s440 = sshll.u32 [#allocation10], 4
      %s441 = int_to_ptr.vmem [resolvable:$true] %s440
      %446 = dma.vmem_to_hbm [thread:$0]  %s441, 256, %s7, [#allocation4], 128, 128, 8
    $region49: #{tpu_custom_call.1} parent=1 // pred_fallthru
      _
    // Predicated region
    $region50: #{tpu_custom_call.1} parent=1 // pred_check
      _
    $region51: #{tpu_custom_call.1} parent=1 // pred_check_branch
      %448 = sbr.rel (0) target = $region53
    $region52: #{tpu_custom_call.1} parent=1 // pred_region
      %449 = dma.done [#allocation4], 256
    $region53: #{tpu_custom_call.1} parent=1 // pred_fallthru
      _
    %450 = vsyncpa [#allocation3], 1
    %451 = vsyncpa [#allocation6], 1
    %452 = vsyncpa [#allocation9], 1
    %453 = vsyncpa [#allocation4], 1

</llo_original>
